<compile_context>
chip_gen: v6e
topology: v6e:2x2x1
jax: 0.10.0
libtpu: 0.0.40
codegen_flags: <defaults>
</compile_context>

<pallas_src>
import jax
import jax.numpy as jnp
from jax.experimental import pallas as pl
from jax.experimental.pallas import tpu as pltpu

NUM_CLASSES = 10
LANES = 128          # padded feature width for hidden / output dims
IN_FEATURES = 784


def mlp_kernel(x_ref, w1_ref, w2_ref, w3_ref, b_ref, o_ref):
    # Cast the activation tile to bf16 in-kernel (MXU-native); accumulate every dot in f32.
    x = x_ref[...].astype(jnp.bfloat16)

    # Layer 1: Linear(784 -> 128pad) + ReLU
    h1 = jnp.dot(x, w1_ref[...], preferred_element_type=jnp.float32)
    h1 = jnp.maximum(h1 + b_ref[0:1, :], 0.0)        # (1,128) bias broadcasts over batch

    # Layer 2: Linear(128pad -> 128pad) + ReLU
    h2 = jnp.dot(h1.astype(jnp.bfloat16), w2_ref[...],
                 preferred_element_type=jnp.float32)
    h2 = jnp.maximum(h2 + b_ref[1:2, :], 0.0)

    # Layer 3: Linear(128pad -> 128pad).  w3's padded columns are zero and b3's padded
    # lanes hold -1e30, so padded class lanes are masked "for free" via the bias add.
    logits = jnp.dot(h2.astype(jnp.bfloat16), w3_ref[...],
                     preferred_element_type=jnp.float32)
    logits = logits + b_ref[2:3, :]

    # Numerically-stable LogSoftmax over the class (lane) axis, in f32.
    m = jnp.max(logits, axis=-1, keepdims=True)
    shifted = logits - m
    lse = jnp.log(jnp.sum(jnp.exp(shifted), axis=-1, keepdims=True))
    o_ref[...] = (shifted - lse).astype(o_ref.dtype)  # lane-dense (tile_b, 128) store


def _round_up(n, m):
    return ((n + m - 1) // m) * m


def _pad2d(a, rows, cols):
    """Zero-pad a 2-D array up to (rows, cols)."""
    return jnp.zeros((rows, cols), a.dtype).at[: a.shape[0], : a.shape[1]].set(a)


def prepare_params(w1, b1, w2, b2, w3, b3):
    """One-time padding / bf16 cast of the weights (hoisted out of the per-call path)."""
    w1_p = _pad2d(w1.astype(jnp.float32), IN_FEATURES, LANES).astype(jnp.bfloat16)
    w2_p = _pad2d(w2.astype(jnp.float32), LANES, LANES).astype(jnp.bfloat16)
    w3_p = _pad2d(w3.astype(jnp.float32), LANES, LANES).astype(jnp.bfloat16)

    # Packed biases: row 0 = b1, row 1 = b2, row 2 = b3 with the padded-class mask folded in.
    b_all = jnp.zeros((3, LANES), jnp.float32)
    b_all = b_all.at[2, NUM_CLASSES:].set(-1e30)
    b_all = b_all.at[0, : b1.size].set(b1.reshape(-1).astype(jnp.float32))
    b_all = b_all.at[1, : b2.size].set(b2.reshape(-1).astype(jnp.float32))
    b_all = b_all.at[2, : b3.size].set(b3.reshape(-1).astype(jnp.float32))
    return w1_p, w2_p, w3_p, b_all


def _choose_tile(B):
    """Batch-tile size: big tiles amortize per-step overhead; >=2 tiles keeps both v7x TCs busy."""
    if B <= 128:
        return _round_up(B, 16)                       # tiny batch: single (16k, 128) tile
    return min(1024, _round_up(pl.cdiv(B, 2), 128))   # >=2 tiles, capped at 1024 rows


def mlp_forward(x, params):
    """x: (B, 784) f32/bf16; params: output of prepare_params()."""
    w1_p, w2_p, w3_p, b_all = params
    B, F = x.shape
    assert F == IN_FEATURES

    tile_b = _choose_tile(B)
    b_pad = _round_up(B, tile_b)
    num_tiles = b_pad // tile_b

    # Only touch x in HBM if the batch is ragged; no dtype re-materialization either way.
    x_in = x if b_pad == B else jnp.pad(x, ((0, b_pad - B), (0, 0)))

    const = lambda shape: pl.BlockSpec(shape, lambda i: (0, 0))   # weights stay resident

    cost = pl.CostEstimate(
        flops=2 * b_pad * (IN_FEATURES * LANES + LANES * LANES + LANES * LANES),
        transcendentals=b_pad * LANES,
        bytes_accessed=(x_in.size * x_in.dtype.itemsize
                        + (w1_p.size + w2_p.size + w3_p.size) * 2
                        + b_all.size * 4
                        + b_pad * LANES * 4),
    )

    out_pad = pl.pallas_call(
        mlp_kernel,
        out_shape=jax.ShapeDtypeStruct((b_pad, LANES), jnp.float32),
        grid=(num_tiles,),
        in_specs=[
            pl.BlockSpec((tile_b, F), lambda i: (i, 0)),   # x: tiled over batch
            const((F, LANES)),                             # w1 (bf16, resident)
            const((LANES, LANES)),                         # w2
            const((LANES, LANES)),                         # w3
            const((3, LANES)),                             # packed biases (f32)
        ],
        out_specs=pl.BlockSpec((tile_b, LANES), lambda i: (i, 0)),
        compiler_params=pltpu.CompilerParams(dimension_semantics=("parallel",)),
        cost_estimate=cost,
    )(x_in, w1_p, w2_p, w3_p, b_all)

    # Strip batch padding and padded class lanes (fuses with the consumer under jit).
    return out_pad[:B, :NUM_CLASSES]


def _init_params(key):
    # Deterministic init mimicking nn.Linear's uniform(-1/sqrt(fan_in), 1/sqrt(fan_in)).
    def linear(key, fan_in, fan_out):
        kw, kb = jax.random.split(key)
        bound = 1.0 / jnp.sqrt(fan_in)
        w = jax.random.uniform(kw, (fan_in, fan_out), jnp.float32, -bound, bound)
        b = jax.random.uniform(kb, (1, fan_out), jnp.float32, -bound, bound)
        return w, b

    k1, k2, k3 = jax.random.split(key, 3)
    w1, b1 = linear(k1, 784, 100)
    w2, b2 = linear(k2, 100, 24)
    w3, b3 = linear(k3, 24, 10)
    return w1, b1, w2, b2, w3, b3


if __name__ == "__main__":
    key = jax.random.PRNGKey(0)
    kx, kp = jax.random.split(key)

    batch = 8
    x = jax.random.normal(kx, (batch, 784), dtype=jnp.float32)
    w1, b1, w2, b2, w3, b3 = _init_params(kp)

    params = prepare_params(w1, b1, w2, b2, w3, b3)   # one-time padding / bf16 cast
    out = mlp_forward(x, params)
    out = jax.block_until_ready(out)

    # Pure-JAX reference mirroring the kernel's bf16-operand / f32-accumulate numerics.
    def ref(x):
        xb = x.astype(jnp.bfloat16)
        h = jnp.maximum(
            jnp.dot(xb, w1.astype(jnp.bfloat16), preferred_element_type=jnp.float32) + b1, 0.0)
        h = jnp.maximum(
            jnp.dot(h.astype(jnp.bfloat16), w2.astype(jnp.bfloat16),
                    preferred_element_type=jnp.float32) + b2, 0.0)
        logits = jnp.dot(h.astype(jnp.bfloat16), w3.astype(jnp.bfloat16),
                         preferred_element_type=jnp.float32) + b3
        return jax.nn.log_softmax(logits, axis=-1)

    expected = ref(x)
    assert out.shape == (batch, NUM_CLASSES)
    assert jnp.allclose(out, expected, atol=5e-3, rtol=5e-3), (
        f"max abs diff = {jnp.max(jnp.abs(out - expected))}")
    print("KERNEL_OK")
</pallas_src>

<mosaic_0001>
module attributes {stable_mosaic.version = 11 : i64} {
  func.func @mlp_kernel(%arg0: i32, %arg1: memref<16x784xf32, #tpu.memory_space<vmem>>, %arg2: memref<784x128xbf16, #tpu.memory_space<vmem>>, %arg3: memref<128x128xbf16, #tpu.memory_space<vmem>>, %arg4: memref<128x128xbf16, #tpu.memory_space<vmem>>, %arg5: memref<3x128xf32, #tpu.memory_space<vmem>>, %arg6: memref<16x128xf32, #tpu.memory_space<vmem>>) attributes {dimension_semantics = [#tpu.dimension_semantics<parallel>], iteration_bounds = array<i64: 1>, scalar_prefetch = 0 : i64, scratch_operands = 0 : i64, tpu.core_type = #tpu.core_type<tc>, window_params = [{transform_indices = @transform_0, window_bounds = array<i64: 16, 784>}, {pipeline_mode = #tpu.pipeline_mode<synchronous>, transform_indices = @transform_1, window_bounds = array<i64: 784, 128>}, {pipeline_mode = #tpu.pipeline_mode<synchronous>, transform_indices = @transform_2, window_bounds = array<i64: 128, 128>}, {pipeline_mode = #tpu.pipeline_mode<synchronous>, transform_indices = @transform_3, window_bounds = array<i64: 128, 128>}, {pipeline_mode = #tpu.pipeline_mode<synchronous>, transform_indices = @transform_4, window_bounds = array<i64: 3, 128>}, {transform_indices = @transform_5, window_bounds = array<i64: 16, 128>}]} {
    %c0 = arith.constant 0 : index
    %c0_0 = arith.constant 0 : index
    %0 = vector.load %arg1[%c0, %c0_0] : memref<16x784xf32, #tpu.memory_space<vmem>>, vector<16x784xf32>
    %1 = arith.truncf %0 : vector<16x784xf32> to vector<16x784xbf16>
    %c0_1 = arith.constant 0 : index
    %c0_2 = arith.constant 0 : index
    %2 = vector.load %arg2[%c0_1, %c0_2] : memref<784x128xbf16, #tpu.memory_space<vmem>>, vector<784x128xbf16>
    %cst = arith.constant dense<0.000000e+00> : vector<16x128xf32>
    %3 = tpu.matmul %1, %2, %cst {dimension_numbers = #tpu.dot_dimension_numbers<[1], [0], [0], [1], [0, 0, 1, 1], [], []>} : vector<16x784xbf16>, vector<784x128xbf16>, vector<16x128xf32> -> vector<16x128xf32>
    %c0_3 = arith.constant 0 : index
    %c0_4 = arith.constant 0 : index
    %4 = vector.load %arg5[%c0_3, %c0_4] : memref<3x128xf32, #tpu.memory_space<vmem>>, vector<1x128xf32>
    %5 = vector.broadcast %4 : vector<1x128xf32> to vector<16x128xf32>
    %6 = arith.addf %3, %5 : vector<16x128xf32>
    %cst_5 = arith.constant 0.000000e+00 : f32
    %7 = vector.broadcast %cst_5 : f32 to vector<16x128xf32>
    %8 = arith.maximumf %6, %7 : vector<16x128xf32>
    %9 = arith.truncf %8 : vector<16x128xf32> to vector<16x128xbf16>
    %c0_6 = arith.constant 0 : index
    %c0_7 = arith.constant 0 : index
    %10 = vector.load %arg3[%c0_6, %c0_7] : memref<128x128xbf16, #tpu.memory_space<vmem>>, vector<128x128xbf16>
    %cst_8 = arith.constant dense<0.000000e+00> : vector<16x128xf32>
    %11 = tpu.matmul %9, %10, %cst_8 {dimension_numbers = #tpu.dot_dimension_numbers<[1], [0], [0], [1], [0, 0, 1, 1], [], []>} : vector<16x128xbf16>, vector<128x128xbf16>, vector<16x128xf32> -> vector<16x128xf32>
    %c1 = arith.constant 1 : index
    %c0_9 = arith.constant 0 : index
    %12 = vector.load %arg5[%c1, %c0_9] : memref<3x128xf32, #tpu.memory_space<vmem>>, vector<1x128xf32>
    %13 = vector.broadcast %12 : vector<1x128xf32> to vector<16x128xf32>
    %14 = arith.addf %11, %13 : vector<16x128xf32>
    %cst_10 = arith.constant 0.000000e+00 : f32
    %15 = vector.broadcast %cst_10 : f32 to vector<16x128xf32>
    %16 = arith.maximumf %14, %15 : vector<16x128xf32>
    %17 = arith.truncf %16 : vector<16x128xf32> to vector<16x128xbf16>
    %c0_11 = arith.constant 0 : index
    %c0_12 = arith.constant 0 : index
    %18 = vector.load %arg4[%c0_11, %c0_12] : memref<128x128xbf16, #tpu.memory_space<vmem>>, vector<128x128xbf16>
    %cst_13 = arith.constant dense<0.000000e+00> : vector<16x128xf32>
    %19 = tpu.matmul %17, %18, %cst_13 {dimension_numbers = #tpu.dot_dimension_numbers<[1], [0], [0], [1], [0, 0, 1, 1], [], []>} : vector<16x128xbf16>, vector<128x128xbf16>, vector<16x128xf32> -> vector<16x128xf32>
    %c2 = arith.constant 2 : index
    %c0_14 = arith.constant 0 : index
    %20 = vector.load %arg5[%c2, %c0_14] : memref<3x128xf32, #tpu.memory_space<vmem>>, vector<1x128xf32>
    %21 = vector.broadcast %20 : vector<1x128xf32> to vector<16x128xf32>
    %22 = arith.addf %19, %21 : vector<16x128xf32>
    %cst_15 = arith.constant dense<0xFF800000> : vector<16xf32>
    %23 = vector.multi_reduction <maximumf>, %22, %cst_15 [1] : vector<16x128xf32> to vector<16xf32>
    %24 = vector.shape_cast %23 : vector<16xf32> to vector<16x1xf32>
    %25 = vector.broadcast %24 : vector<16x1xf32> to vector<16x128xf32>
    %26 = arith.subf %22, %25 : vector<16x128xf32>
    %27 = math.exp %26 : vector<16x128xf32>
    %cst_16 = arith.constant dense<0.000000e+00> : vector<16xf32>
    %28 = vector.multi_reduction <add>, %27, %cst_16 [1] : vector<16x128xf32> to vector<16xf32>
    %29 = vector.shape_cast %28 : vector<16xf32> to vector<16x1xf32>
    %30 = math.log %29 : vector<16x1xf32>
    %31 = vector.broadcast %30 : vector<16x1xf32> to vector<16x128xf32>
    %32 = arith.subf %26, %31 : vector<16x128xf32>
    %c0_17 = arith.constant 0 : index
    %c0_18 = arith.constant 0 : index
    %33 = vector.load %arg6[%c0_17, %c0_18] : memref<16x128xf32, #tpu.memory_space<vmem>>, vector<16x128xf32>
    tpu.vector_store %arg6[%c0_17, %c0_18], %32 {strides = array<i32>} : memref<16x128xf32, #tpu.memory_space<vmem>>, vector<16x128xf32>,
    return
  }
  func.func @transform_0(%arg0: i32) -> (i32, i32) {
    %c0_i32 = arith.constant 0 : i32
    %c0_i32_0 = arith.constant 0 : i32
    return %arg0, %c0_i32 : i32, i32
  }
  func.func @transform_1(%arg0: i32) -> (i32, i32) {
    %c0_i32 = arith.constant 0 : i32
    %c0_i32_0 = arith.constant 0 : i32
    %c0_i32_1 = arith.constant 0 : i32
    return %c0_i32, %c0_i32_0 : i32, i32
  }
  func.func @transform_2(%arg0: i32) -> (i32, i32) {
    %c0_i32 = arith.constant 0 : i32
    %c0_i32_0 = arith.constant 0 : i32
    %c0_i32_1 = arith.constant 0 : i32
    return %c0_i32, %c0_i32_0 : i32, i32
  }
  func.func @transform_3(%arg0: i32) -> (i32, i32) {
    %c0_i32 = arith.constant 0 : i32
    %c0_i32_0 = arith.constant 0 : i32
    %c0_i32_1 = arith.constant 0 : i32
    return %c0_i32, %c0_i32_0 : i32, i32
  }
  func.func @transform_4(%arg0: i32) -> (i32, i32) {
    %c0_i32 = arith.constant 0 : i32
    %c0_i32_0 = arith.constant 0 : i32
    %c0_i32_1 = arith.constant 0 : i32
    return %c0_i32, %c0_i32_0 : i32, i32
  }
  func.func @transform_5(%arg0: i32) -> (i32, i32) {
    %c0_i32 = arith.constant 0 : i32
    %c0_i32_0 = arith.constant 0 : i32
    return %arg0, %c0_i32 : i32, i32
  }
}

</mosaic_0001>

<llo_original>
// kernel: tpu_custom_call.1
$region0: #{tpu_custom_call.1}
  #allocation0 [shape = 'u32[]', space=smem, size = 0x4, offset = 0x4, fixed_abs, tag = 'smem constant byte address 0x4 - core index']
  #allocation1 [shape = 'u32[144,128]{1,0:T(1,128)}', space=vmem, size = 0x12000, scoped, tag = 'internal scratch']
  %s0 = inlined_call_operand.hbm [shape: f32[16,784], index: 0, kind: input, shape index: {}]
  %s1 = inlined_call_operand.hbm [shape: bf16[784,128], index: 1, kind: input, shape index: {}]
  %s2 = inlined_call_operand.hbm [shape: bf16[128,128], index: 2, kind: input, shape index: {}]
  %s3 = inlined_call_operand.hbm [shape: bf16[128,128], index: 3, kind: input, shape index: {}]
  %s4 = inlined_call_operand.vmem [shape: f32[3,128], index: 4, kind: input, shape index: {}]
  %s5 = inlined_call_operand.hbm [shape: f32[16,128], index: 5, kind: output, shape index: {}]
  %s6 = sld [smem:[#allocation0]]
  $region46: #{tpu_custom_call.1} parent=0
    _
  %s8 = ssub.s32 1, %s6
  %s9 = scalar_select 0, %s8, %s6
  $region1: #{tpu_custom_call.1} parent=0
    #allocation2 [shape = 'u8[57344]{0}', space=vmem, size = 0xe000, scoped, tag = 'input window, operand 0, single buffered']
    #allocation3 [shape = 's32[1]{0}', space=sflag, size = 0x4, scoped, tag = 'scoped memory for tpu_custom_call.1']
    #allocation4 [shape = 's32[1]{0}', space=sflag, size = 0x4, scoped, tag = 'scoped memory for tpu_custom_call.1']
    #allocation5 [shape = 'u8[200704]{0}', space=vmem, size = 0x31000, scoped, tag = 'input window, operand 1, single buffered']
    #allocation6 [shape = 's32[1]{0}', space=sflag, size = 0x4, scoped, tag = 'scoped memory for tpu_custom_call.1']
    #allocation7 [shape = 'u8[32768]{0}', space=vmem, size = 0x8000, scoped, tag = 'input window, operand 2, single buffered']
    #allocation8 [shape = 'u8[32768]{0}', space=vmem, size = 0x8000, scoped, tag = 'input window, operand 3, single buffered']
    #allocation9 [shape = 's32[1]{0}', space=sflag, size = 0x4, scoped, tag = 'scoped memory for tpu_custom_call.1']
    #allocation10 [shape = 'u8[8192]{0}', space=vmem, size = 0x2000, scoped, tag = 'output window, operand 0, single buffered']
    %10 = vsyncpa [#allocation3], 0
    %11 = vsyncpa [#allocation6], 0
    %12 = vsyncpa [#allocation9], 0
    %13 = vsyncpa [#allocation4], 0
    // Predicated region
    $region2: #{tpu_custom_call.1} parent=1 // pred_check
      _
    $region3: #{tpu_custom_call.1} parent=1 // pred_check_branch
      %15 = sbr.rel (0) target = $region5
    $region4: #{tpu_custom_call.1} parent=1 // pred_region
      %s17 = ssub.s32 1792, 1792
      %18 = vsyncadd [#allocation3], %s17
      %s19 = sshll.u32 [#allocation2], 4
      %s20 = int_to_ptr.vmem [resolvable:$true] %s19
      %25 = dma.hbm_to_vmem [thread:$0]  %s0, 1792, %s20, [#allocation3], 896, 896, 56
    $region5: #{tpu_custom_call.1} parent=1 // pred_fallthru
      _
    // Predicated region
    $region6: #{tpu_custom_call.1} parent=1 // pred_check
      _
    $region7: #{tpu_custom_call.1} parent=1 // pred_check_branch
      %27 = sbr.rel (0) target = $region9
    $region8: #{tpu_custom_call.1} parent=1 // pred_region
      %s29 = ssub.s32 6272, 6272
      %30 = vsyncadd [#allocation6], %s29
      %s31 = sshll.u32 [#allocation5], 4
      %s32 = int_to_ptr.vmem [resolvable:$true] %s31
      %37 = dma.hbm_to_vmem [thread:$0]  %s1, 6272, %s32, [#allocation6], 64, 64, 4
    $region9: #{tpu_custom_call.1} parent=1 // pred_fallthru
      _
    // Predicated region
    $region10: #{tpu_custom_call.1} parent=1 // pred_check
      _
    $region11: #{tpu_custom_call.1} parent=1 // pred_check_branch
      %39 = sbr.rel (0) target = $region13
    $region12: #{tpu_custom_call.1} parent=1 // pred_region
      %s41 = ssub.s32 1024, 1024
      %42 = vsyncadd [#allocation6], %s41
      %s43 = sshll.u32 [#allocation7], 4
      %s44 = int_to_ptr.vmem [resolvable:$true] %s43
      %49 = dma.hbm_to_vmem [thread:$0]  %s2, 1024, %s44, [#allocation6], 64, 64, 4
    $region13: #{tpu_custom_call.1} parent=1 // pred_fallthru
      _
    // Predicated region
    $region14: #{tpu_custom_call.1} parent=1 // pred_check
      _
    $region15: #{tpu_custom_call.1} parent=1 // pred_check_branch
      %51 = sbr.rel (0) target = $region17
    $region16: #{tpu_custom_call.1} parent=1 // pred_region
      %s53 = ssub.s32 1024, 1024
      %54 = vsyncadd [#allocation9], %s53
      %s55 = sshll.u32 [#allocation8], 4
      %s56 = int_to_ptr.vmem [resolvable:$true] %s55
      %61 = dma.hbm_to_vmem [thread:$0]  %s3, 1024, %s56, [#allocation9], 64, 64, 4
    $region17: #{tpu_custom_call.1} parent=1 // pred_fallthru
      _
    // Predicated region
    $region18: #{tpu_custom_call.1} parent=1 // pred_check
      _
    $region19: #{tpu_custom_call.1} parent=1 // pred_check_branch
      %63 = sbr.rel (0) target = $region21
    $region20: #{tpu_custom_call.1} parent=1 // pred_region
      _
    $region21: #{tpu_custom_call.1} parent=1 // pred_fallthru
      _
    // Predicated region
    $region22: #{tpu_custom_call.1} parent=1 // pred_check
      _
    $region23: #{tpu_custom_call.1} parent=1 // pred_check_branch
      %65 = sbr.rel (0) target = $region25
    $region24: #{tpu_custom_call.1} parent=1 // pred_region
      %66 = dma.done [#allocation3], 1792
    $region25: #{tpu_custom_call.1} parent=1 // pred_fallthru
      _
    // Predicated region
    $region26: #{tpu_custom_call.1} parent=1 // pred_check
      _
    $region27: #{tpu_custom_call.1} parent=1 // pred_check_branch
      %68 = sbr.rel (0) target = $region29
    $region28: #{tpu_custom_call.1} parent=1 // pred_region
      %69 = dma.done [#allocation6], 6272
    $region29: #{tpu_custom_call.1} parent=1 // pred_fallthru
      _
    // Predicated region
    $region30: #{tpu_custom_call.1} parent=1 // pred_check
      _
    $region31: #{tpu_custom_call.1} parent=1 // pred_check_branch
      %71 = sbr.rel (0) target = $region33
    $region32: #{tpu_custom_call.1} parent=1 // pred_region
      %72 = dma.done [#allocation6], 1024
    $region33: #{tpu_custom_call.1} parent=1 // pred_fallthru
      _
    // Predicated region
    $region34: #{tpu_custom_call.1} parent=1 // pred_check
      _
    $region35: #{tpu_custom_call.1} parent=1 // pred_check_branch
      %74 = sbr.rel (0) target = $region37
    $region36: #{tpu_custom_call.1} parent=1 // pred_region
      %75 = dma.done [#allocation9], 1024
    $region37: #{tpu_custom_call.1} parent=1 // pred_fallthru
      _
    %v77 = vld [vmem:[#allocation2] sm:$0xff]
    %v78 = vld [vmem:[#allocation2 + $0x8] sm:$0xff]
    %v79 = vld [vmem:[#allocation2 + $0x10] sm:$0xff]
    %v80 = vld [vmem:[#allocation2 + $0x18] sm:$0xff]
    %v81 = vld [vmem:[#allocation2 + $0x20] sm:$0xff]
    %v82 = vld [vmem:[#allocation2 + $0x28] sm:$0xff]
    %v83 = vld [vmem:[#allocation2 + $0x30] sm:$0xff]
    %v84 = vld [vmem:[#allocation2 + $0x38] sm:$0xff]
    %v85 = vld [vmem:[#allocation2 + $0x40] sm:$0xff]
    %v86 = vld [vmem:[#allocation2 + $0x48] sm:$0xff]
    %v87 = vld [vmem:[#allocation2 + $0x50] sm:$0xff]
    %v88 = vld [vmem:[#allocation2 + $0x58] sm:$0xff]
    %v89 = vld [vmem:[#allocation2 + $0x60] sm:$0xff]
    %v90 = vld [vmem:[#allocation2 + $0x68] sm:$0xff]
    %v91 = vpack.c.bf16 %v84, %v77
    %v92 = vpack.c.bf16 %v85, %v78
    %v93 = vpack.c.bf16 %v86, %v79
    %v94 = vpack.c.bf16 %v87, %v80
    %v95 = vpack.c.bf16 %v88, %v81
    %v96 = vpack.c.bf16 %v89, %v82
    %v97 = vpack.c.bf16 %v90, %v83
    %v98 = vld [vmem:[#allocation5] sm:$0xf]
    %v99 = vld [vmem:[#allocation5 + $0x4] sm:$0xf]
    %v100 = vld [vmem:[#allocation5 + $0x8] sm:$0xf]
    %v101 = vld [vmem:[#allocation5 + $0xc] sm:$0xf]
    %v102 = vld [vmem:[#allocation5 + $0x10] sm:$0xf]
    %v103 = vld [vmem:[#allocation5 + $0x14] sm:$0xf]
    %v104 = vld [vmem:[#allocation5 + $0x18] sm:$0xf]
    %v105 = vld [vmem:[#allocation5 + $0x1c] sm:$0xf]
    %v106 = vld [vmem:[#allocation5 + $0x20] sm:$0xf]
    %v107 = vld [vmem:[#allocation5 + $0x24] sm:$0xf]
    %v108 = vld [vmem:[#allocation5 + $0x28] sm:$0xf]
    %v109 = vld [vmem:[#allocation5 + $0x2c] sm:$0xf]
    %v110 = vld [vmem:[#allocation5 + $0x30] sm:$0xf]
    %v111 = vld [vmem:[#allocation5 + $0x34] sm:$0xf]
    %v112 = vld [vmem:[#allocation5 + $0x38] sm:$0xf]
    %v113 = vld [vmem:[#allocation5 + $0x3c] sm:$0xf]
    %v114 = vld [vmem:[#allocation5 + $0x40] sm:$0xf]
    %v115 = vld [vmem:[#allocation5 + $0x44] sm:$0xf]
    %v116 = vld [vmem:[#allocation5 + $0x48] sm:$0xf]
    %v117 = vld [vmem:[#allocation5 + $0x4c] sm:$0xf]
    %v118 = vld [vmem:[#allocation5 + $0x50] sm:$0xf]
    %v119 = vld [vmem:[#allocation5 + $0x54] sm:$0xf]
    %v120 = vld [vmem:[#allocation5 + $0x58] sm:$0xf]
    %v121 = vld [vmem:[#allocation5 + $0x5c] sm:$0xf]
    %v122 = vld [vmem:[#allocation5 + $0x60] sm:$0xf]
    %v123 = vld [vmem:[#allocation5 + $0x64] sm:$0xf]
    %v124 = vld [vmem:[#allocation5 + $0x68] sm:$0xf]
    %v125 = vld [vmem:[#allocation5 + $0x6c] sm:$0xf]
    %v126 = vld [vmem:[#allocation5 + $0x70] sm:$0xf]
    %v127 = vld [vmem:[#allocation5 + $0x74] sm:$0xf]
    %v128 = vld [vmem:[#allocation5 + $0x78] sm:$0xf]
    %v129 = vld [vmem:[#allocation5 + $0x7c] sm:$0xf]
    %v130 = vld [vmem:[#allocation5 + $0x80] sm:$0xf]
    %v131 = vld [vmem:[#allocation5 + $0x84] sm:$0xf]
    %v132 = vld [vmem:[#allocation5 + $0x88] sm:$0xf]
    %v133 = vld [vmem:[#allocation5 + $0x8c] sm:$0xf]
    %v134 = vld [vmem:[#allocation5 + $0x90] sm:$0xf]
    %v135 = vld [vmem:[#allocation5 + $0x94] sm:$0xf]
    %v136 = vld [vmem:[#allocation5 + $0x98] sm:$0xf]
    %v137 = vld [vmem:[#allocation5 + $0x9c] sm:$0xf]
    %v138 = vld [vmem:[#allocation5 + $0xa0] sm:$0xf]
    %v139 = vld [vmem:[#allocation5 + $0xa4] sm:$0xf]
    %v140 = vld [vmem:[#allocation5 + $0xa8] sm:$0xf]
    %v141 = vld [vmem:[#allocation5 + $0xac] sm:$0xf]
    %v142 = vld [vmem:[#allocation5 + $0xb0] sm:$0xf]
    %v143 = vld [vmem:[#allocation5 + $0xb4] sm:$0xf]
    %v144 = vld [vmem:[#allocation5 + $0xb8] sm:$0xf]
    %v145 = vld [vmem:[#allocation5 + $0xbc] sm:$0xf]
    %v146 = vld [vmem:[#allocation5 + $0xc0] sm:$0xf]
    %v147 = vld [vmem:[#allocation5 + $0xc4] sm:$0xf]
    %v148 = vld [vmem:[#allocation5 + $0xc8] sm:$0xf]
    %v149 = vld [vmem:[#allocation5 + $0xcc] sm:$0xf]
    %v150 = vld [vmem:[#allocation5 + $0xd0] sm:$0xf]
    %v151 = vld [vmem:[#allocation5 + $0xd4] sm:$0xf]
    %v152 = vld [vmem:[#allocation5 + $0xd8] sm:$0xf]
    %v153 = vld [vmem:[#allocation5 + $0xdc] sm:$0xf]
    %v154 = vld [vmem:[#allocation5 + $0xe0] sm:$0xf]
    %v155 = vld [vmem:[#allocation5 + $0xe4] sm:$0xf]
    %v156 = vld [vmem:[#allocation5 + $0xe8] sm:$0xf]
    %v157 = vld [vmem:[#allocation5 + $0xec] sm:$0xf]
    %v158 = vld [vmem:[#allocation5 + $0xf0] sm:$0xf]
    %v159 = vld [vmem:[#allocation5 + $0xf4] sm:$0xf]
    %v160 = vld [vmem:[#allocation5 + $0xf8] sm:$0xf]
    %v161 = vld [vmem:[#allocation5 + $0xfc] sm:$0xf]
    %v162 = vld [vmem:[#allocation5 + $0x100] sm:$0xf]
    %v163 = vld [vmem:[#allocation5 + $0x104] sm:$0xf]
    %v164 = vld [vmem:[#allocation5 + $0x108] sm:$0xf]
    %v165 = vld [vmem:[#allocation5 + $0x10c] sm:$0xf]
    %v166 = vld [vmem:[#allocation5 + $0x110] sm:$0xf]
    %v167 = vld [vmem:[#allocation5 + $0x114] sm:$0xf]
    %v168 = vld [vmem:[#allocation5 + $0x118] sm:$0xf]
    %v169 = vld [vmem:[#allocation5 + $0x11c] sm:$0xf]
    %v170 = vld [vmem:[#allocation5 + $0x120] sm:$0xf]
    %v171 = vld [vmem:[#allocation5 + $0x124] sm:$0xf]
    %v172 = vld [vmem:[#allocation5 + $0x128] sm:$0xf]
    %v173 = vld [vmem:[#allocation5 + $0x12c] sm:$0xf]
    %v174 = vld [vmem:[#allocation5 + $0x130] sm:$0xf]
    %v175 = vld [vmem:[#allocation5 + $0x134] sm:$0xf]
    %v176 = vld [vmem:[#allocation5 + $0x138] sm:$0xf]
    %v177 = vld [vmem:[#allocation5 + $0x13c] sm:$0xf]
    %v178 = vld [vmem:[#allocation5 + $0x140] sm:$0xf]
    %v179 = vld [vmem:[#allocation5 + $0x144] sm:$0xf]
    %v180 = vld [vmem:[#allocation5 + $0x148] sm:$0xf]
    %v181 = vld [vmem:[#allocation5 + $0x14c] sm:$0xf]
    %v182 = vld [vmem:[#allocation5 + $0x150] sm:$0xf]
    %v183 = vld [vmem:[#allocation5 + $0x154] sm:$0xf]
    %v184 = vld [vmem:[#allocation5 + $0x158] sm:$0xf]
    %v185 = vld [vmem:[#allocation5 + $0x15c] sm:$0xf]
    %v186 = vld [vmem:[#allocation5 + $0x160] sm:$0xf]
    %v187 = vld [vmem:[#allocation5 + $0x164] sm:$0xf]
    %v188 = vld [vmem:[#allocation5 + $0x168] sm:$0xf]
    %v189 = vld [vmem:[#allocation5 + $0x16c] sm:$0xf]
    %v190 = vld [vmem:[#allocation5 + $0x170] sm:$0xf]
    %v191 = vld [vmem:[#allocation5 + $0x174] sm:$0xf]
    %v192 = vld [vmem:[#allocation5 + $0x178] sm:$0xf]
    %v193 = vld [vmem:[#allocation5 + $0x17c] sm:$0xf]
    %v194 = vld [vmem:[#allocation5 + $0x180] sm:$0xf]
    %v195 = vld [vmem:[#allocation5 + $0x184] sm:$0xf]
    %v196 = vld [vmem:[%s4] sm:$0x1]
    %v197 = vlaneseq
    %v198 = vshrl.u32 %v197, 7
    %v199 = vsub.s32 0, %v198
    %v200 = vrot.slane %v196, %v199
    %v299 = vunpack.c.l.b16 %v98
    %v300 = vunpack.c.l.b16 %v99
    %v301 = vunpack.c.l.b16 %v100
    %v302 = vunpack.c.l.b16 %v101
    %v303 = vunpack.c.l.b16 %v102
    %v304 = vunpack.c.l.b16 %v103
    %v305 = vunpack.c.l.b16 %v104
    %v306 = vunpack.c.l.b16 %v105
    %v307 = vunpack.c.l.b16 %v106
    %v308 = vunpack.c.l.b16 %v107
    %v309 = vunpack.c.l.b16 %v108
    %v310 = vunpack.c.l.b16 %v109
    %v311 = vunpack.c.l.b16 %v110
    %v312 = vunpack.c.l.b16 %v111
    %v313 = vunpack.c.l.b16 %v112
    %v314 = vunpack.c.l.b16 %v113
    %v315 = vunpack.c.l.b16 %v114
    %v316 = vunpack.c.l.b16 %v115
    %v317 = vunpack.c.l.b16 %v116
    %v318 = vunpack.c.l.b16 %v117
    %v319 = vunpack.c.l.b16 %v118
    %v320 = vunpack.c.l.b16 %v119
    %v321 = vunpack.c.l.b16 %v120
    %v322 = vunpack.c.l.b16 %v121
    %v323 = vunpack.c.l.b16 %v122
    %v324 = vunpack.c.l.b16 %v123
    %v325 = vunpack.c.l.b16 %v124
    %v326 = vunpack.c.l.b16 %v125
    %v327 = vunpack.c.l.b16 %v126
    %v328 = vunpack.c.l.b16 %v127
    %v329 = vunpack.c.l.b16 %v128
    %v330 = vunpack.c.l.b16 %v129
    %v331 = vunpack.c.l.b16 %v130
    %v332 = vunpack.c.l.b16 %v131
    %v333 = vunpack.c.l.b16 %v132
    %v334 = vunpack.c.l.b16 %v133
    %v335 = vunpack.c.l.b16 %v134
    %v336 = vunpack.c.l.b16 %v135
    %v337 = vunpack.c.l.b16 %v136
    %v338 = vunpack.c.l.b16 %v137
    %v339 = vunpack.c.l.b16 %v138
    %v340 = vunpack.c.l.b16 %v139
    %v341 = vunpack.c.l.b16 %v140
    %v342 = vunpack.c.l.b16 %v141
    %v343 = vunpack.c.l.b16 %v142
    %v344 = vunpack.c.l.b16 %v143
    %v345 = vunpack.c.l.b16 %v144
    %v346 = vunpack.c.l.b16 %v145
    %v347 = vunpack.c.l.b16 %v146
    %v348 = vunpack.c.l.b16 %v147
    %v349 = vunpack.c.l.b16 %v148
    %v350 = vunpack.c.l.b16 %v149
    %v351 = vunpack.c.l.b16 %v150
    %v352 = vunpack.c.l.b16 %v151
    %v353 = vunpack.c.l.b16 %v152
    %v354 = vunpack.c.l.b16 %v153
    %v355 = vunpack.c.l.b16 %v154
    %v356 = vunpack.c.l.b16 %v155
    %v357 = vunpack.c.l.b16 %v156
    %v358 = vunpack.c.l.b16 %v157
    %v359 = vunpack.c.l.b16 %v158
    %v360 = vunpack.c.l.b16 %v159
    %v361 = vunpack.c.l.b16 %v160
    %v362 = vunpack.c.l.b16 %v161
    %v363 = vunpack.c.l.b16 %v162
    %v364 = vunpack.c.l.b16 %v163
    %v365 = vunpack.c.l.b16 %v164
    %v366 = vunpack.c.l.b16 %v165
    %v367 = vunpack.c.l.b16 %v166
    %v368 = vunpack.c.l.b16 %v167
    %v369 = vunpack.c.l.b16 %v168
    %v370 = vunpack.c.l.b16 %v169
    %v371 = vunpack.c.l.b16 %v170
    %v372 = vunpack.c.l.b16 %v171
    %v373 = vunpack.c.l.b16 %v172
    %v374 = vunpack.c.l.b16 %v173
    %v375 = vunpack.c.l.b16 %v174
    %v376 = vunpack.c.l.b16 %v175
    %v377 = vunpack.c.l.b16 %v176
    %v378 = vunpack.c.l.b16 %v177
    %v379 = vunpack.c.l.b16 %v178
    %v380 = vunpack.c.l.b16 %v179
    %v381 = vunpack.c.l.b16 %v180
    %v382 = vunpack.c.l.b16 %v181
    %v383 = vunpack.c.l.b16 %v182
    %v384 = vunpack.c.l.b16 %v183
    %v385 = vunpack.c.l.b16 %v184
    %v386 = vunpack.c.l.b16 %v185
    %v387 = vunpack.c.l.b16 %v186
    %v388 = vunpack.c.l.b16 %v187
    %v389 = vunpack.c.l.b16 %v188
    %v390 = vunpack.c.l.b16 %v189
    %v391 = vunpack.c.l.b16 %v190
    %v392 = vunpack.c.l.b16 %v191
    %v393 = vunpack.c.l.b16 %v192
    %v394 = vunpack.c.l.b16 %v193
    %v395 = vunpack.c.l.b16 %v194
    %v396 = vunpack.c.l.b16 %v195
    %v397 = vpack.c.b16 %v300, %v299
    %v398 = vpack.c.b16 %v302, %v301
    %v399 = vpack.c.b16 %v304, %v303
    %v400 = vpack.c.b16 %v306, %v305
    %v401 = vpack.c.b16 %v308, %v307
    %v402 = vpack.c.b16 %v310, %v309
    %v403 = vpack.c.b16 %v312, %v311
    %v404 = vpack.c.b16 %v314, %v313
    %v405 = vpack.c.b16 %v316, %v315
    %v406 = vpack.c.b16 %v318, %v317
    %v407 = vpack.c.b16 %v320, %v319
    %v408 = vpack.c.b16 %v322, %v321
    %v409 = vpack.c.b16 %v324, %v323
    %v410 = vpack.c.b16 %v326, %v325
    %v411 = vpack.c.b16 %v328, %v327
    %v412 = vpack.c.b16 %v330, %v329
    %v413 = vpack.c.b16 %v332, %v331
    %v414 = vpack.c.b16 %v334, %v333
    %v415 = vpack.c.b16 %v336, %v335
    %v416 = vpack.c.b16 %v338, %v337
    %v417 = vpack.c.b16 %v340, %v339
    %v418 = vpack.c.b16 %v342, %v341
    %v419 = vpack.c.b16 %v344, %v343
    %v420 = vpack.c.b16 %v346, %v345
    %v421 = vpack.c.b16 %v348, %v347
    %v422 = vpack.c.b16 %v350, %v349
    %v423 = vpack.c.b16 %v352, %v351
    %v424 = vpack.c.b16 %v354, %v353
    %v425 = vpack.c.b16 %v356, %v355
    %v426 = vpack.c.b16 %v358, %v357
    %v427 = vpack.c.b16 %v360, %v359
    %v428 = vpack.c.b16 %v362, %v361
    %v429 = vpack.c.b16 %v364, %v363
    %v430 = vpack.c.b16 %v366, %v365
    %v431 = vpack.c.b16 %v368, %v367
    %v432 = vpack.c.b16 %v370, %v369
    %v433 = vpack.c.b16 %v372, %v371
    %v434 = vpack.c.b16 %v374, %v373
    %v435 = vpack.c.b16 %v376, %v375
    %v436 = vpack.c.b16 %v378, %v377
    %v437 = vpack.c.b16 %v380, %v379
    %v438 = vpack.c.b16 %v382, %v381
    %v439 = vpack.c.b16 %v384, %v383
    %v440 = vpack.c.b16 %v386, %v385
    %v441 = vpack.c.b16 %v388, %v387
    %v442 = vpack.c.b16 %v390, %v389
    %v443 = vpack.c.b16 %v392, %v391
    %v444 = vpack.c.b16 %v394, %v393
    %v445 = vpack.c.b16 %v396, %v395
    %vm495 = vcmask 130048
    %v497 = vsel %vm495, %v97, 0
    %499 = vmatprep.subr.bf16.mxu0 0
    %500 = vmatpush1.bf16.msra.mxu0 %v404
    %501 = vmatprep.subr.bf16.mxu0 0
    %502 = vmatpush1.bf16.msra.mxu0 %v403
    %503 = vmatprep.subr.bf16.mxu0 0
    %504 = vmatpush1.bf16.msra.mxu0 %v402
    %505 = vmatprep.subr.bf16.mxu0 0
    %506 = vmatpush1.bf16.msra.mxu0 %v401
    %507 = vmatprep.subr.bf16.mxu0 0
    %508 = vmatpush1.bf16.msra.mxu0 %v400
    %509 = vmatprep.subr.bf16.mxu0 0
    %510 = vmatpush1.bf16.msra.mxu0 %v399
    %511 = vmatprep.subr.bf16.mxu0 0
    %512 = vmatpush1.bf16.msra.mxu0 %v398
    %513 = vmatprep.subr.bf16.mxu0 0
    %514 = vmatpush1.bf16.msra.mxu0 %v397
    %515 = vmatprep.subr.bf16.mxu0 0
    %516 = vmatpush2.bf16.msra.mxu0 %v412
    %517 = vmatprep.subr.bf16.mxu0 0
    %518 = vmatpush2.bf16.msra.mxu0 %v411
    %519 = vmatprep.subr.bf16.mxu0 0
    %520 = vmatpush2.bf16.msra.mxu0 %v410
    %521 = vmatprep.subr.bf16.mxu0 0
    %522 = vmatpush2.bf16.msra.mxu0 %v409
    %523 = vmatprep.subr.bf16.mxu0 0
    %524 = vmatpush2.bf16.msra.mxu0 %v408
    %525 = vmatprep.subr.bf16.mxu0 0
    %526 = vmatpush2.bf16.msra.mxu0 %v407
    %527 = vmatprep.subr.bf16.mxu0 0
    %528 = vmatpush2.bf16.msra.mxu0 %v406
    %529 = vmatprep.subr.bf16.mxu0 0
    %530 = vmatpush2.bf16.msra.mxu0 %v405
    %531 = vmatprep.mubr.bf16.mxu0 %v92
    %532 = vmatmul.mubr.bf16.gmra.mxu0 %v91
    %v533 = vpop.f32.mrf.mxu0
    %v534 = vadd.f32 %v200, %v533
    %v535 = vpop.f32.mrf.mxu0
    %v536 = vpop.f32.mrf.mxu0
    %v537 = vadd.f32 %v200, %v536
    %v538 = vpop.f32.mrf.mxu0
    %539 = vdwg.mxu0
    %540 = vmatprep.subr.bf16.mxu0 0
    %541 = vmatpush1.bf16.msra.mxu0 %v420
    %542 = vmatprep.subr.bf16.mxu0 0
    %543 = vmatpush1.bf16.msra.mxu0 %v419
    %544 = vmatprep.subr.bf16.mxu0 0
    %545 = vmatpush1.bf16.msra.mxu0 %v418
    %546 = vmatprep.subr.bf16.mxu0 0
    %547 = vmatpush1.bf16.msra.mxu0 %v417
    %548 = vmatprep.subr.bf16.mxu0 0
    %549 = vmatpush1.bf16.msra.mxu0 %v416
    %550 = vmatprep.subr.bf16.mxu0 0
    %551 = vmatpush1.bf16.msra.mxu0 %v415
    %552 = vmatprep.subr.bf16.mxu0 0
    %553 = vmatpush1.bf16.msra.mxu0 %v414
    %554 = vmatprep.subr.bf16.mxu0 0
    %555 = vmatpush1.bf16.msra.mxu0 %v413
    %556 = vmatprep.subr.bf16.mxu0 0
    %557 = vmatpush2.bf16.msra.mxu0 %v428
    %558 = vmatprep.subr.bf16.mxu0 0
    %559 = vmatpush2.bf16.msra.mxu0 %v427
    %560 = vmatprep.subr.bf16.mxu0 0
    %561 = vmatpush2.bf16.msra.mxu0 %v426
    %562 = vmatprep.subr.bf16.mxu0 0
    %563 = vmatpush2.bf16.msra.mxu0 %v425
    %564 = vmatprep.subr.bf16.mxu0 0
    %565 = vmatpush2.bf16.msra.mxu0 %v424
    %566 = vmatprep.subr.bf16.mxu0 0
    %567 = vmatpush2.bf16.msra.mxu0 %v423
    %568 = vmatprep.subr.bf16.mxu0 0
    %569 = vmatpush2.bf16.msra.mxu0 %v422
    %570 = vmatprep.subr.bf16.mxu0 0
    %571 = vmatpush2.bf16.msra.mxu0 %v421
    %572 = vmatprep.mubr.bf16.mxu0 %v94
    %573 = vmatmul.mubr.bf16.gmra.mxu0 %v93
    %v574 = vpop.f32.mrf.mxu0
    %v575 = vadd.f32 %v534, %v574
    %v576 = vpop.f32.mrf.mxu0
    %v577 = vpop.f32.mrf.mxu0
    %v578 = vadd.f32 %v537, %v577
    %v579 = vpop.f32.mrf.mxu0
    %580 = vdwg.mxu0
    %581 = vmatprep.subr.bf16.mxu0 0
    %582 = vmatpush1.bf16.msra.mxu0 %v436
    %583 = vmatprep.subr.bf16.mxu0 0
    %584 = vmatpush1.bf16.msra.mxu0 %v435
    %585 = vmatprep.subr.bf16.mxu0 0
    %586 = vmatpush1.bf16.msra.mxu0 %v434
    %587 = vmatprep.subr.bf16.mxu0 0
    %588 = vmatpush1.bf16.msra.mxu0 %v433
    %589 = vmatprep.subr.bf16.mxu0 0
    %590 = vmatpush1.bf16.msra.mxu0 %v432
    %591 = vmatprep.subr.bf16.mxu0 0
    %592 = vmatpush1.bf16.msra.mxu0 %v431
    %593 = vmatprep.subr.bf16.mxu0 0
    %594 = vmatpush1.bf16.msra.mxu0 %v430
    %595 = vmatprep.subr.bf16.mxu0 0
    %596 = vmatpush1.bf16.msra.mxu0 %v429
    %597 = vmatprep.subr.bf16.mxu0 0
    %598 = vmatpush2.bf16.msra.mxu0 %v444
    %599 = vmatprep.subr.bf16.mxu0 0
    %600 = vmatpush2.bf16.msra.mxu0 %v443
    %601 = vmatprep.subr.bf16.mxu0 0
    %602 = vmatpush2.bf16.msra.mxu0 %v442
    %603 = vmatprep.subr.bf16.mxu0 0
    %604 = vmatpush2.bf16.msra.mxu0 %v441
    %605 = vmatprep.subr.bf16.mxu0 0
    %606 = vmatpush2.bf16.msra.mxu0 %v440
    %607 = vmatprep.subr.bf16.mxu0 0
    %608 = vmatpush2.bf16.msra.mxu0 %v439
    %609 = vmatprep.subr.bf16.mxu0 0
    %610 = vmatpush2.bf16.msra.mxu0 %v438
    %611 = vmatprep.subr.bf16.mxu0 0
    %612 = vmatpush2.bf16.msra.mxu0 %v437
    %613 = vmatprep.mubr.bf16.mxu0 %v96
    %614 = vmatmul.mubr.bf16.gmra.mxu0 %v95
    %v615 = vpop.f32.mrf.mxu0
    %v616 = vadd.f32 %v575, %v615
    %v617 = vpop.f32.mrf.mxu0
    %v618 = vpop.f32.mrf.mxu0
    %v619 = vadd.f32 %v578, %v618
    %v620 = vpop.f32.mrf.mxu0
    %621 = vdwg.mxu0
    %622 = vmatprep.subr.bf16.mxu0 0
    %623 = vmatpush1.bf16.msra.mxu0 0
    %624 = vmatprep.subr.bf16.mxu0 0
    %625 = vmatpush1.bf16.msra.mxu0 0
    %626 = vmatprep.subr.bf16.mxu0 0
    %627 = vmatpush1.bf16.msra.mxu0 0
    %628 = vmatprep.subr.bf16.mxu0 0
    %629 = vmatpush1.bf16.msra.mxu0 0
    %630 = vmatprep.subr.bf16.mxu0 0
    %631 = vmatpush1.bf16.msra.mxu0 0
    %632 = vmatprep.subr.bf16.mxu0 0
    %633 = vmatpush1.bf16.msra.mxu0 0
    %634 = vmatprep.subr.bf16.mxu0 0
    %635 = vmatpush1.bf16.msra.mxu0 0
    %636 = vmatprep.subr.bf16.mxu0 0
    %637 = vmatpush1.bf16.msra.mxu0 %v445
    %638 = vmatprep.subr.bf16.mxu0 0
    %639 = vmatpush2.bf16.msra.mxu0 0
    %640 = vmatprep.subr.bf16.mxu0 0
    %641 = vmatpush2.bf16.msra.mxu0 0
    %642 = vmatprep.subr.bf16.mxu0 0
    %643 = vmatpush2.bf16.msra.mxu0 0
    %644 = vmatprep.subr.bf16.mxu0 0
    %645 = vmatpush2.bf16.msra.mxu0 0
    %646 = vmatprep.subr.bf16.mxu0 0
    %647 = vmatpush2.bf16.msra.mxu0 0
    %648 = vmatprep.subr.bf16.mxu0 0
    %649 = vmatpush2.bf16.msra.mxu0 0
    %650 = vmatprep.subr.bf16.mxu0 0
    %651 = vmatpush2.bf16.msra.mxu0 0
    %652 = vmatprep.subr.bf16.mxu0 0
    %653 = vmatpush2.bf16.msra.mxu0 0
    %654 = vmatprep.mubr.bf16.mxu0 0
    %655 = vmatmul.mubr.bf16.gmra.mxu0 %v497
    %v656 = vpop.f32.mrf.mxu0
    %v657 = vadd.f32 %v616, %v656
    %v658 = vpop.f32.mrf.mxu0
    %v659 = vpop.f32.mrf.mxu0
    %v660 = vadd.f32 %v619, %v659
    %v661 = vpop.f32.mrf.mxu0
    %662 = vdwg.mxu0
    %v663 = vmax.f32 %v657, 0.0
    %v664 = vmax.f32 %v660, 0.0
    %v665 = vpack.c.bf16 %v664, %v663
    %v666 = vld [vmem:[#allocation7] sm:$0xf]
    %v667 = vld [vmem:[#allocation7 + $0x4] sm:$0xf]
    %v668 = vld [vmem:[#allocation7 + $0x8] sm:$0xf]
    %v669 = vld [vmem:[#allocation7 + $0xc] sm:$0xf]
    %v670 = vld [vmem:[#allocation7 + $0x10] sm:$0xf]
    %v671 = vld [vmem:[#allocation7 + $0x14] sm:$0xf]
    %v672 = vld [vmem:[#allocation7 + $0x18] sm:$0xf]
    %v673 = vld [vmem:[#allocation7 + $0x1c] sm:$0xf]
    %v674 = vld [vmem:[#allocation7 + $0x20] sm:$0xf]
    %v675 = vld [vmem:[#allocation7 + $0x24] sm:$0xf]
    %v676 = vld [vmem:[#allocation7 + $0x28] sm:$0xf]
    %v677 = vld [vmem:[#allocation7 + $0x2c] sm:$0xf]
    %v678 = vld [vmem:[#allocation7 + $0x30] sm:$0xf]
    %v679 = vld [vmem:[#allocation7 + $0x34] sm:$0xf]
    %v680 = vld [vmem:[#allocation7 + $0x38] sm:$0xf]
    %v681 = vld [vmem:[#allocation7 + $0x3c] sm:$0xf]
    %v682 = vld [vmem:[%s4 + $0x1] sm:$0x1]
    %v683 = vlaneseq
    %v684 = vshrl.u32 %v683, 7
    %v685 = vsub.s32 0, %v684
    %v686 = vrot.slane %v682, %v685
    %v703 = vunpack.c.l.b16 %v666
    %v704 = vunpack.c.l.b16 %v667
    %v705 = vunpack.c.l.b16 %v668
    %v706 = vunpack.c.l.b16 %v669
    %v707 = vunpack.c.l.b16 %v670
    %v708 = vunpack.c.l.b16 %v671
    %v709 = vunpack.c.l.b16 %v672
    %v710 = vunpack.c.l.b16 %v673
    %v711 = vunpack.c.l.b16 %v674
    %v712 = vunpack.c.l.b16 %v675
    %v713 = vunpack.c.l.b16 %v676
    %v714 = vunpack.c.l.b16 %v677
    %v715 = vunpack.c.l.b16 %v678
    %v716 = vunpack.c.l.b16 %v679
    %v717 = vunpack.c.l.b16 %v680
    %v718 = vunpack.c.l.b16 %v681
    %v719 = vpack.c.b16 %v704, %v703
    %v720 = vpack.c.b16 %v706, %v705
    %v721 = vpack.c.b16 %v708, %v707
    %v722 = vpack.c.b16 %v710, %v709
    %v723 = vpack.c.b16 %v712, %v711
    %v724 = vpack.c.b16 %v714, %v713
    %v725 = vpack.c.b16 %v716, %v715
    %v726 = vpack.c.b16 %v718, %v717
    %735 = vmatprep.subr.bf16.mxu0 0
    %736 = vmatpush1.bf16.msra.mxu0 %v726
    %737 = vmatprep.subr.bf16.mxu0 0
    %738 = vmatpush1.bf16.msra.mxu0 %v725
    %739 = vmatprep.subr.bf16.mxu0 0
    %740 = vmatpush1.bf16.msra.mxu0 %v724
    %741 = vmatprep.subr.bf16.mxu0 0
    %742 = vmatpush1.bf16.msra.mxu0 %v723
    %743 = vmatprep.subr.bf16.mxu0 0
    %744 = vmatpush1.bf16.msra.mxu0 %v722
    %745 = vmatprep.subr.bf16.mxu0 0
    %746 = vmatpush1.bf16.msra.mxu0 %v721
    %747 = vmatprep.subr.bf16.mxu0 0
    %748 = vmatpush1.bf16.msra.mxu0 %v720
    %749 = vmatprep.subr.bf16.mxu0 0
    %750 = vmatpush1.bf16.msra.mxu0 %v719
    %751 = vmatprep.subr.bf16.mxu0 0
    %752 = vmatpush2.bf16.msra.mxu0 0
    %753 = vmatprep.subr.bf16.mxu0 0
    %754 = vmatpush2.bf16.msra.mxu0 0
    %755 = vmatprep.subr.bf16.mxu0 0
    %756 = vmatpush2.bf16.msra.mxu0 0
    %757 = vmatprep.subr.bf16.mxu0 0
    %758 = vmatpush2.bf16.msra.mxu0 0
    %759 = vmatprep.subr.bf16.mxu0 0
    %760 = vmatpush2.bf16.msra.mxu0 0
    %761 = vmatprep.subr.bf16.mxu0 0
    %762 = vmatpush2.bf16.msra.mxu0 0
    %763 = vmatprep.subr.bf16.mxu0 0
    %764 = vmatpush2.bf16.msra.mxu0 0
    %765 = vmatprep.subr.bf16.mxu0 0
    %766 = vmatpush2.bf16.msra.mxu0 0
    %767 = vmatprep.mubr.bf16.mxu0 0
    %768 = vmatmul.mubr.bf16.gmra.mxu0 %v665
    %v769 = vpop.f32.mrf.mxu0
    %v770 = vadd.f32 %v686, %v769
    %v771 = vpop.f32.mrf.mxu0
    %v772 = vpop.f32.mrf.mxu0
    %v773 = vadd.f32 %v686, %v772
    %v774 = vpop.f32.mrf.mxu0
    %775 = vdwg.mxu0
    %v776 = vmax.f32 %v770, 0.0
    %v777 = vmax.f32 %v773, 0.0
    %v778 = vpack.c.bf16 %v777, %v776
    %v779 = vld [vmem:[#allocation8] sm:$0xf]
    %v780 = vld [vmem:[#allocation8 + $0x4] sm:$0xf]
    %v781 = vld [vmem:[#allocation8 + $0x8] sm:$0xf]
    %v782 = vld [vmem:[#allocation8 + $0xc] sm:$0xf]
    %v783 = vld [vmem:[#allocation8 + $0x10] sm:$0xf]
    %v784 = vld [vmem:[#allocation8 + $0x14] sm:$0xf]
    %v785 = vld [vmem:[#allocation8 + $0x18] sm:$0xf]
    %v786 = vld [vmem:[#allocation8 + $0x1c] sm:$0xf]
    %v787 = vld [vmem:[#allocation8 + $0x20] sm:$0xf]
    %v788 = vld [vmem:[#allocation8 + $0x24] sm:$0xf]
    %v789 = vld [vmem:[#allocation8 + $0x28] sm:$0xf]
    %v790 = vld [vmem:[#allocation8 + $0x2c] sm:$0xf]
    %v791 = vld [vmem:[#allocation8 + $0x30] sm:$0xf]
    %v792 = vld [vmem:[#allocation8 + $0x34] sm:$0xf]
    %v793 = vld [vmem:[#allocation8 + $0x38] sm:$0xf]
    %v794 = vld [vmem:[#allocation8 + $0x3c] sm:$0xf]
    %v795 = vld [vmem:[%s4 + $0x2] sm:$0x1]
    %v796 = vlaneseq
    %v797 = vshrl.u32 %v796, 7
    %v798 = vsub.s32 0, %v797
    %v799 = vrot.slane %v795, %v798
    %v816 = vunpack.c.l.b16 %v779
    %v817 = vunpack.c.l.b16 %v780
    %v818 = vunpack.c.l.b16 %v781
    %v819 = vunpack.c.l.b16 %v782
    %v820 = vunpack.c.l.b16 %v783
    %v821 = vunpack.c.l.b16 %v784
    %v822 = vunpack.c.l.b16 %v785
    %v823 = vunpack.c.l.b16 %v786
    %v824 = vunpack.c.l.b16 %v787
    %v825 = vunpack.c.l.b16 %v788
    %v826 = vunpack.c.l.b16 %v789
    %v827 = vunpack.c.l.b16 %v790
    %v828 = vunpack.c.l.b16 %v791
    %v829 = vunpack.c.l.b16 %v792
    %v830 = vunpack.c.l.b16 %v793
    %v831 = vunpack.c.l.b16 %v794
    %v832 = vpack.c.b16 %v817, %v816
    %v833 = vpack.c.b16 %v819, %v818
    %v834 = vpack.c.b16 %v821, %v820
    %v835 = vpack.c.b16 %v823, %v822
    %v836 = vpack.c.b16 %v825, %v824
    %v837 = vpack.c.b16 %v827, %v826
    %v838 = vpack.c.b16 %v829, %v828
    %v839 = vpack.c.b16 %v831, %v830
    %848 = vmatprep.subr.bf16.mxu0 0
    %849 = vmatpush1.bf16.msra.mxu0 %v839
    %850 = vmatprep.subr.bf16.mxu0 0
    %851 = vmatpush1.bf16.msra.mxu0 %v838
    %852 = vmatprep.subr.bf16.mxu0 0
    %853 = vmatpush1.bf16.msra.mxu0 %v837
    %854 = vmatprep.subr.bf16.mxu0 0
    %855 = vmatpush1.bf16.msra.mxu0 %v836
    %856 = vmatprep.subr.bf16.mxu0 0
    %857 = vmatpush1.bf16.msra.mxu0 %v835
    %858 = vmatprep.subr.bf16.mxu0 0
    %859 = vmatpush1.bf16.msra.mxu0 %v834
    %860 = vmatprep.subr.bf16.mxu0 0
    %861 = vmatpush1.bf16.msra.mxu0 %v833
    %862 = vmatprep.subr.bf16.mxu0 0
    %863 = vmatpush1.bf16.msra.mxu0 %v832
    %864 = vmatprep.subr.bf16.mxu0 0
    %865 = vmatpush2.bf16.msra.mxu0 0
    %866 = vmatprep.subr.bf16.mxu0 0
    %867 = vmatpush2.bf16.msra.mxu0 0
    %868 = vmatprep.subr.bf16.mxu0 0
    %869 = vmatpush2.bf16.msra.mxu0 0
    %870 = vmatprep.subr.bf16.mxu0 0
    %871 = vmatpush2.bf16.msra.mxu0 0
    %872 = vmatprep.subr.bf16.mxu0 0
    %873 = vmatpush2.bf16.msra.mxu0 0
    %874 = vmatprep.subr.bf16.mxu0 0
    %875 = vmatpush2.bf16.msra.mxu0 0
    %876 = vmatprep.subr.bf16.mxu0 0
    %877 = vmatpush2.bf16.msra.mxu0 0
    %878 = vmatprep.subr.bf16.mxu0 0
    %879 = vmatpush2.bf16.msra.mxu0 0
    %880 = vmatprep.mubr.bf16.mxu0 0
    %881 = vmatmul.mubr.bf16.gmra.mxu0 %v778
    %v882 = vpop.f32.mrf.mxu0
    %v883 = vadd.f32 %v799, %v882
    %v884 = vpop.f32.mrf.mxu0
    %v885 = vpop.f32.mrf.mxu0
    %v886 = vadd.f32 %v799, %v885
    %v887 = vpop.f32.mrf.mxu0
    %888 = vdwg.mxu0
    %889 = vmax.xlane.f32.xlu0 %v883
    %v890 = vpop.xlane.xlu0 %889
    %891 = vmax.xlane.f32.xlu0 %v886
    %v892 = vpop.xlane.xlu0 %891
    %v893 = vsub.f32 %v883, %v890
    %v894 = vsub.f32 %v886, %v892
    %v895 = vmul.f32 %v893, 1.442695
    %v896 = vpow.pop %v895
    %v897 = vmul.f32 %v894, 1.442695
    %v898 = vpow.pop %v897
    %899 = vadd.xlane.f32.xlu0 %v896
    %v900 = vpop.xlane.xlu0 %899
    %901 = vadd.xlane.f32.xlu0 %v898
    %v902 = vpop.xlane.xlu0 %901
    %v903 = vlog2.pop %v900
    %v904 = vmul.f32 %v903, 0.6931472
    %v905 = vlog2.pop %v902
    %v906 = vmul.f32 %v905, 0.6931472
    %v907 = vsub.f32 %v893, %v904
    %v908 = vsub.f32 %v894, %v906
    %909 = vst [vmem:[#allocation10] sm:$0xff] %v907
    %910 = vst [vmem:[#allocation10 + $0x8] sm:$0xff] %v908
    // Predicated region
    $region38: #{tpu_custom_call.1} parent=1 // pred_check
      _
    $region39: #{tpu_custom_call.1} parent=1 // pred_check_branch
      %912 = sbr.rel (0) target = $region41
    $region40: #{tpu_custom_call.1} parent=1 // pred_region
      %s914 = ssub.s32 256, 256
      %915 = vsyncadd [#allocation4], %s914
      %s916 = sshll.u32 [#allocation10], 4
      %s917 = int_to_ptr.vmem [resolvable:$true] %s916
      %922 = dma.vmem_to_hbm [thread:$0]  %s917, 256, %s5, [#allocation4], 128, 128, 8
    $region41: #{tpu_custom_call.1} parent=1 // pred_fallthru
      _
    // Predicated region
    $region42: #{tpu_custom_call.1} parent=1 // pred_check
      _
    $region43: #{tpu_custom_call.1} parent=1 // pred_check_branch
      %924 = sbr.rel (0) target = $region45
    $region44: #{tpu_custom_call.1} parent=1 // pred_region
      %925 = dma.done [#allocation4], 256
    $region45: #{tpu_custom_call.1} parent=1 // pred_fallthru
      _
    %926 = vsyncpa [#allocation3], 1
    %927 = vsyncpa [#allocation6], 1
    %928 = vsyncpa [#allocation9], 1
    %929 = vsyncpa [#allocation4], 1

</llo_original>
